<compile_context>
chip_gen: v7x
topology: tpu7x:2x2x1
jax: 0.10.0
libtpu: 0.0.40
codegen_flags: <defaults>
</compile_context>

<pallas_src>
import functools

import jax
import jax.numpy as jnp
from jax import lax
from jax.experimental import pallas as pl
from jax.experimental.pallas import tpu as pltpu


_PIPELINE_VMEM_BYTES = 26 * 1024 * 1024   # budget for the double-buffered input blocks
_VMEM_LIMIT_BYTES = 40 * 1024 * 1024      # scoped-VMEM limit handed to Mosaic


def _round_up(x, m):
    return ((x + m - 1) // m) * m


def _cdiv(a, b):
    return (a + b - 1) // b


def _vmem_lane_bytes(c, itemsize):
    """Per-lane VMEM bytes of one logits block + one targets block (sublane-padded)."""
    sub = max(1, 32 // itemsize)          # sublanes packed per 32-bit word column
    logits = _round_up(c, sub) * itemsize
    targets = 8 * 4                       # (1, T) int32 block pads to 8 sublanes
    return logits + targets


def _choose_tile_n(s_arr, c, itemsize):
    """Lane tile: multiple of 128, <= s_arr, sized so double-buffered input blocks
    fit the VMEM budget, and balanced so the ragged tail block stays small."""
    per_lane = 2 * _vmem_lane_bytes(c, itemsize)                 # x2: double-buffered
    cap = max(128, (_PIPELINE_VMEM_BYTES // per_lane) // 128 * 128)
    full = (s_arr // 128) * 128                                  # largest mult of 128 <= s_arr
    n_tiles = _cdiv(s_arr, cap)
    tile = _round_up(_cdiv(s_arr, n_tiles), 128)                 # balanced tiles
    return max(128, min(tile, cap, full))


def _focal_kernel(gamma_int, gamma_f, s_valid, tiles_per_chunk, use_alpha, *refs):
    """One (batch, chunk, tile) grid step: focal loss over a (C, TILE_N) slab,
    lane-reduced to a scalar and accumulated into the resident output block."""
    if use_alpha:
        pre_ref, tar_ref, alpha_ref, out_ref = refs
    else:
        pre_ref, tar_ref, out_ref = refs
        alpha_ref = None

    p = pl.program_id(1)          # spatial chunk (parallel)
    j = pl.program_id(2)          # tile within chunk (sequential / arbitrary)
    tile_n = pre_ref.shape[2]

    # Fresh accumulator at the start of each (batch, chunk) segment.
    @pl.when(j == 0)
    def _():
        out_ref[...] = jnp.zeros_like(out_ref)

    x = pre_ref[0].astype(jnp.float32)        # (C, T) logits, class-major
    t = tar_ref[0]                            # (1, T) int32 labels

    # Numerically stable log-softmax statistics along the class (sublane) axis.
    m = jnp.max(x, axis=0, keepdims=True)                         # (1, T)
    z = x - m                                                     # (C, T)
    lse = jnp.log(jnp.sum(jnp.exp(z), axis=0, keepdims=True))     # (1, T)

    # One-hot "gather" of log p_t without materializing the full log-softmax:
    #   log p_t = (x_t - m) - lse
    cls = lax.broadcasted_iota(jnp.int32, x.shape, 0)             # (C, T)
    onehot = cls == t                                             # (C, T) bool
    z_t = jnp.sum(jnp.where(onehot, z, 0.0), axis=0, keepdims=True)  # (1, T)
    logp_t = z_t - lse                                            # (1, T)

    p_t = jnp.exp(logp_t)
    omp = 1.0 - p_t
    if gamma_int is not None and 0 <= gamma_int <= 8:
        # Repeated multiply: matches integer_pow numerics, keeps the EUP free
        # for the softmax exp.  Start from omp (not ones) -> one fewer multiply.
        if gamma_int == 0:
            focal = jnp.ones_like(omp)
        else:
            focal = omp
            for _ in range(gamma_int - 1):
                focal = focal * omp
    else:
        # Fractional gamma: clamp so rounding (p_t slightly > 1) never yields a
        # negative base; pow via exp/log on the EUP (log(0) -> -inf -> exp -> 0).
        base = jnp.maximum(omp, 0.0)
        focal = jnp.exp(gamma_f * jnp.log(base))

    if use_alpha:
        alpha = alpha_ref[...].astype(jnp.float32)                # (C, 1)
        alpha_t = jnp.sum(jnp.where(onehot, alpha, 0.0), axis=0, keepdims=True)
        loss = -(alpha_t * focal * logp_t)                        # (1, T)
    else:
        # alpha is None in the module -> ones(class_channel) -> identity factor.
        loss = -(focal * logp_t)                                  # (1, T)

    # Mask the ragged spatial tail (and any clamped duplicate block of the last
    # chunk) instead of padding the logits in HBM.
    blk = p * tiles_per_chunk + j
    col = blk * tile_n + lax.broadcasted_iota(jnp.int32, (1, tile_n), 1)
    loss = jnp.where(col < s_valid, loss, 0.0)

    # Lane-reduce to a scalar (VALU + idle XLU slot) and accumulate into the
    # tiny resident output block -- avoids a wide accumulator RMW per step.
    partial = jnp.sum(loss, axis=1, keepdims=True)                # (1, 1)
    out_ref[...] += partial[None]                                 # broadcast over 128 lanes


def _reference_focal_loss(pre, tar, alpha, gamma=2, reduction=True):
    """Pure-JAX reference mirroring the PyTorch forward (also the large-C fallback)."""
    b, c = pre.shape[0], pre.shape[1]
    pre2 = jnp.transpose(pre.reshape(b, c, -1), (0, 2, 1)).reshape(-1, c)
    tar2 = tar.reshape(-1).astype(jnp.int32)
    logp = jax.nn.log_softmax(pre2.astype(jnp.float32), axis=-1)
    logp_t = jnp.take_along_axis(logp, tar2[:, None], axis=1)[:, 0]
    p_t = jnp.exp(logp_t)
    a_t = jnp.asarray(alpha, jnp.float32)[tar2]
    fl = -1.0 * a_t * (1.0 - p_t) ** gamma * logp_t
    return jnp.mean(fl) if reduction else jnp.sum(fl)


def focal_loss(pre, tar, alpha=None, gamma=2, reduction=True, *, tile_n=None):
    """pre: (B, C, ...) float logits; tar: (B, ...) integer class labels.
    alpha=None matches the module default (ones(class_channel))."""
    b, c = pre.shape[0], pre.shape[1]
    s = 1
    for d in pre.shape[2:]:
        s *= d
    n_elems = b * s

    itemsize = jnp.dtype(pre.dtype).itemsize

    # Guard very large class counts: the minimum (1, C, 128) double-buffered
    # block would blow past the VMEM budget (worst on v7x's 64 MiB VMEM).
    # TODO(synk): tile the class axis (online softmax over C chunks) instead of
    # falling back to plain XLA for that regime.
    if 2 * _vmem_lane_bytes(c, itemsize) * 128 > _PIPELINE_VMEM_BYTES:
        a = jnp.ones((c,), jnp.float32) if alpha is None else jnp.asarray(alpha, jnp.float32)
        return _reference_focal_loss(pre, tar, a, gamma=gamma, reduction=reduction)

    # Class-major, transpose-free: (B, C, ...) -> (B, C, S) is a free reshape.
    pre3 = pre.reshape(b, c, s)
    tar3 = tar.reshape(b, 1, s).astype(jnp.int32)

    # Only tiny inputs (S < 128) are padded; large logits are never copied --
    # the ragged tail is masked inside the kernel instead.
    s_arr = s
    if s < 128:
        pad = 128 - s
        pre3 = jnp.pad(pre3, ((0, 0), (0, 0), (0, pad)))
        tar3 = jnp.pad(tar3, ((0, 0), (0, 0), (0, pad)))
        s_arr = 128

    if tile_n is None:
        tile_n = _choose_tile_n(s_arr, c, itemsize)
    num_tiles = _cdiv(s_arr, tile_n)

    # Second "parallel" axis so both v7x TensorCores stay busy when the batch
    # alone can't be split evenly (neutral on single-core v5e/v6e).
    p_chunks = 2 if (b % 2 == 1 and num_tiles >= 2) else 1
    tiles_per_chunk = _cdiv(num_tiles, p_chunks)
    last_blk = num_tiles - 1

    if p_chunks == 1:
        def _blk(i, p, j):
            return j
    else:
        def _blk(i, p, j):
            # Clamp the (possible) over-hanging step of the last chunk to an
            # in-bounds block; the kernel masks its contribution to zero.
            return jnp.minimum(p * tiles_per_chunk + j, last_blk)

    use_alpha = alpha is not None
    gamma_f = float(gamma)
    gamma_int = int(gamma_f) if gamma_f == int(gamma_f) else None

    in_specs = [
        pl.BlockSpec((1, c, tile_n), lambda i, p, j: (i, 0, _blk(i, p, j))),   # logits
        pl.BlockSpec((1, 1, tile_n), lambda i, p, j: (i, 0, _blk(i, p, j))),   # targets
    ]
    args = [pre3, tar3]
    if use_alpha:
        in_specs.append(pl.BlockSpec((c, 1), lambda i, p, j: (0, 0)))          # alpha
        args.append(jnp.asarray(alpha, jnp.float32).reshape(c, 1))

    kernel = functools.partial(_focal_kernel, gamma_int, gamma_f, s,
                               tiles_per_chunk, use_alpha)

    out = pl.pallas_call(
        kernel,
        out_shape=jax.ShapeDtypeStruct((b * p_chunks, 1, 128), jnp.float32),
        grid_spec=pltpu.PrefetchScalarGridSpec(
            num_scalar_prefetch=0,
            grid=(b, p_chunks, tiles_per_chunk),
            in_specs=in_specs,
            out_specs=pl.BlockSpec((1, 1, 128),
                                   lambda i, p, j: (i * p_chunks + p, 0, 0)),
        ),
        compiler_params=pltpu.CompilerParams(
            dimension_semantics=("parallel", "parallel", "arbitrary"),
            vmem_limit_bytes=_VMEM_LIMIT_BYTES,
        ),
    )(*args)

    total = jnp.sum(out[:, 0, 0])      # tiny (B * P,) reduction done by XLA
    return total / n_elems if reduction else total


if __name__ == "__main__":
    key = jax.random.PRNGKey(0)
    k1, k2, k3, k4, k5, k6 = jax.random.split(key, 6)

    # 1) Module-default config: B=2, C=4, 16x16 spatial, alpha=None, gamma=2, mean.
    B, C, H, W = 2, 4, 16, 16
    pre_a = jax.random.normal(k1, (B, C, H, W), dtype=jnp.float32)
    tar_a = jax.random.randint(k2, (B, H, W), 0, C, dtype=jnp.int32)
    ones_alpha = jnp.ones((C,), dtype=jnp.float32)
    loss = focal_loss(pre_a, tar_a, alpha=None, gamma=2, reduction=True)
    jax.block_until_ready(loss)
    ref = _reference_focal_loss(pre_a, tar_a, ones_alpha, gamma=2, reduction=True)
    assert jnp.allclose(loss, ref, rtol=1e-5, atol=1e-5), (loss, ref)

    # 2) Ragged small spatial (S=63 < 128), explicit non-uniform alpha, sum reduction.
    H2, W2 = 9, 7
    pre_b = jax.random.normal(k3, (B, C, H2, W2), dtype=jnp.float32)
    tar_b = jax.random.randint(k4, (B, H2, W2), 0, C, dtype=jnp.int32)
    alpha_v = jnp.array([0.25, 0.5, 1.0, 2.0], dtype=jnp.float32)
    loss2 = focal_loss(pre_b, tar_b, alpha_v, gamma=2, reduction=False)
    jax.block_until_ready(loss2)
    ref2 = _reference_focal_loss(pre_b, tar_b, alpha_v, gamma=2, reduction=False)
    assert jnp.allclose(loss2, ref2, rtol=1e-5, atol=1e-4), (loss2, ref2)

    # 3) Odd batch (B=1) + forced small tile: exercises the multi-tile grid, the
    #    dual-chunk parallel axis, the clamped over-hang block and the in-kernel
    #    ragged-tail mask (S=380, tile_n=128 -> 3 tiles over 2 chunks).
    H3, W3 = 20, 19
    pre_c = jax.random.normal(k5, (1, C, H3, W3), dtype=jnp.float32)
    tar_c = jax.random.randint(k6, (1, H3, W3), 0, C, dtype=jnp.int32)
    loss3 = focal_loss(pre_c, tar_c, alpha_v, gamma=2, reduction=True, tile_n=128)
    jax.block_until_ready(loss3)
    ref3 = _reference_focal_loss(pre_c, tar_c, alpha_v, gamma=2, reduction=True)
    assert jnp.allclose(loss3, ref3, rtol=1e-5, atol=1e-5), (loss3, ref3)

    # 4) Fractional gamma -> exp/log pow path with the (1-p) >= 0 clamp.
    loss4 = focal_loss(pre_a, tar_a, alpha=None, gamma=1.5, reduction=True)
    jax.block_until_ready(loss4)
    ref4 = _reference_focal_loss(pre_a, tar_a, ones_alpha, gamma=1.5, reduction=True)
    assert jnp.allclose(loss4, ref4, rtol=1e-5, atol=1e-5), (loss4, ref4)

    print("KERNEL_OK")
</pallas_src>

<mosaic_0001>
module attributes {stable_mosaic.version = 11 : i64} {
  func.func @_focal_kernel(%arg0: i32, %arg1: i32, %arg2: i32, %arg3: memref<1x4x256xf32, #tpu.memory_space<vmem>>, %arg4: memref<1x1x256xi32, #tpu.memory_space<vmem>>, %arg5: memref<1x1x128xf32, #tpu.memory_space<vmem>>) attributes {dimension_semantics = [#tpu.dimension_semantics<parallel>, #tpu.dimension_semantics<parallel>, #tpu.dimension_semantics<arbitrary>], iteration_bounds = array<i64: 2, 1, 1>, scalar_prefetch = 0 : i64, scratch_operands = 0 : i64, tpu.core_type = #tpu.core_type<tc>, window_params = [{transform_indices = @transform_0, window_bounds = array<i64: 1, 4, 256>}, {transform_indices = @transform_1, window_bounds = array<i64: 1, 1, 256>}, {transform_indices = @transform_2, window_bounds = array<i64: 1, 1, 128>}]} {
    %c0_i32 = arith.constant 0 : i32
    %0 = arith.cmpi eq, %arg2, %c0_i32 : i32
    %1 = arith.extui %0 : i1 to i32
    %c0_i32_0 = arith.constant 0 : i32
    %2 = arith.cmpi ne, %1, %c0_i32_0 : i32
    scf.if %2 {
      %cst_20 = arith.constant 0.000000e+00 : f32
      %47 = vector.broadcast %cst_20 : f32 to vector<1x1x128xf32>
      %c0_21 = arith.constant 0 : index
      %c0_22 = arith.constant 0 : index
      %c0_23 = arith.constant 0 : index
      %48 = vector.load %arg5[%c0_21, %c0_22, %c0_23] : memref<1x1x128xf32, #tpu.memory_space<vmem>>, vector<1x1x128xf32>
      tpu.vector_store %arg5[%c0_21, %c0_22, %c0_23], %47 {strides = array<i32>} : memref<1x1x128xf32, #tpu.memory_space<vmem>>, vector<1x1x128xf32>,
    } else {
    }
    %c0 = arith.constant 0 : index
    %c0_1 = arith.constant 0 : index
    %c0_2 = arith.constant 0 : index
    %3 = vector.load %arg3[%c0, %c0_1, %c0_2] : memref<1x4x256xf32, #tpu.memory_space<vmem>>, vector<1x4x256xf32>
    %4 = vector.shape_cast %3 : vector<1x4x256xf32> to vector<4x256xf32>
    %c0_3 = arith.constant 0 : index
    %c0_4 = arith.constant 0 : index
    %c0_5 = arith.constant 0 : index
    %5 = vector.load %arg4[%c0_3, %c0_4, %c0_5] : memref<1x1x256xi32, #tpu.memory_space<vmem>>, vector<1x1x256xi32>
    %6 = vector.shape_cast %5 : vector<1x1x256xi32> to vector<1x256xi32>
    %cst = arith.constant dense<0xFF800000> : vector<256xf32>
    %7 = vector.multi_reduction <maximumf>, %4, %cst [0] : vector<4x256xf32> to vector<256xf32>
    %8 = vector.shape_cast %7 : vector<256xf32> to vector<1x256xf32>
    %9 = vector.broadcast %8 : vector<1x256xf32> to vector<4x256xf32>
    %10 = arith.subf %4, %9 : vector<4x256xf32>
    %11 = math.exp %10 : vector<4x256xf32>
    %cst_6 = arith.constant dense<0.000000e+00> : vector<256xf32>
    %12 = vector.multi_reduction <add>, %11, %cst_6 [0] : vector<4x256xf32> to vector<256xf32>
    %13 = vector.shape_cast %12 : vector<256xf32> to vector<1x256xf32>
    %14 = math.log %13 : vector<1x256xf32>
    %15 = tpu.iota {dimensions = array<i32: 0>} : vector<4x256xi32>
    %16 = vector.broadcast %6 : vector<1x256xi32> to vector<4x256xi32>
    %17 = arith.cmpi eq, %15, %16 : vector<4x256xi32>
    %cst_7 = arith.constant 0.000000e+00 : f32
    %18 = vector.broadcast %cst_7 : f32 to vector<4x256xf32>
    %19 = arith.select %17, %10, %18 : vector<4x256xi1>, vector<4x256xf32>
    %cst_8 = arith.constant dense<0.000000e+00> : vector<256xf32>
    %20 = vector.multi_reduction <add>, %19, %cst_8 [0] : vector<4x256xf32> to vector<256xf32>
    %21 = vector.shape_cast %20 : vector<256xf32> to vector<1x256xf32>
    %22 = arith.subf %21, %14 : vector<1x256xf32>
    %23 = math.exp %22 : vector<1x256xf32>
    %cst_9 = arith.constant 1.000000e+00 : f32
    %24 = vector.broadcast %cst_9 : f32 to vector<1x256xf32>
    %25 = arith.subf %24, %23 : vector<1x256xf32>
    %26 = arith.mulf %25, %25 : vector<1x256xf32>
    %27 = arith.mulf %26, %22 : vector<1x256xf32>
    %cst_10 = arith.constant 0.000000e+00 : f32
    %28 = vector.broadcast %cst_10 : f32 to vector<1x256xf32>
    %29 = arith.subf %28, %27 : vector<1x256xf32>
    %c1_i32 = arith.constant 1 : i32
    %30 = arith.muli %arg1, %c1_i32 : i32
    %31 = arith.addi %30, %arg2 : i32
    %c256_i32 = arith.constant 256 : i32
    %32 = arith.muli %31, %c256_i32 : i32
    %33 = tpu.iota {dimensions = array<i32: 1>} : vector<1x256xi32>
    %34 = vector.broadcast %32 : i32 to vector<1x256xi32>
    %35 = arith.addi %34, %33 : vector<1x256xi32>
    %c256_i32_11 = arith.constant 256 : i32
    %36 = vector.broadcast %c256_i32_11 : i32 to vector<1x256xi32>
    %37 = arith.cmpi slt, %35, %36 : vector<1x256xi32>
    %cst_12 = arith.constant 0.000000e+00 : f32
    %38 = vector.broadcast %cst_12 : f32 to vector<1x256xf32>
    %39 = arith.select %37, %29, %38 : vector<1x256xi1>, vector<1x256xf32>
    %cst_13 = arith.constant dense<0.000000e+00> : vector<1xf32>
    %40 = vector.multi_reduction <add>, %39, %cst_13 [1] : vector<1x256xf32> to vector<1xf32>
    %41 = vector.shape_cast %40 : vector<1xf32> to vector<1x1xf32>
    %c0_14 = arith.constant 0 : index
    %c0_15 = arith.constant 0 : index
    %c0_16 = arith.constant 0 : index
    %42 = vector.load %arg5[%c0_14, %c0_15, %c0_16] : memref<1x1x128xf32, #tpu.memory_space<vmem>>, vector<1x1x128xf32>
    %43 = vector.shape_cast %41 : vector<1x1xf32> to vector<1x1x1xf32>
    %44 = vector.broadcast %43 : vector<1x1x1xf32> to vector<1x1x128xf32>
    %45 = arith.addf %42, %44 : vector<1x1x128xf32>
    %c0_17 = arith.constant 0 : index
    %c0_18 = arith.constant 0 : index
    %c0_19 = arith.constant 0 : index
    %46 = vector.load %arg5[%c0_17, %c0_18, %c0_19] : memref<1x1x128xf32, #tpu.memory_space<vmem>>, vector<1x1x128xf32>
    tpu.vector_store %arg5[%c0_17, %c0_18, %c0_19], %45 {strides = array<i32>} : memref<1x1x128xf32, #tpu.memory_space<vmem>>, vector<1x1x128xf32>,
    return
  }
  func.func @transform_0(%arg0: i32, %arg1: i32, %arg2: i32) -> (i32, i32, i32) {
    %c0_i32 = arith.constant 0 : i32
    %c0_i32_0 = arith.constant 0 : i32
    return %arg0, %c0_i32, %arg2 : i32, i32, i32
  }
  func.func @transform_1(%arg0: i32, %arg1: i32, %arg2: i32) -> (i32, i32, i32) {
    %c0_i32 = arith.constant 0 : i32
    %c0_i32_0 = arith.constant 0 : i32
    return %arg0, %c0_i32, %arg2 : i32, i32, i32
  }
  func.func @transform_2(%arg0: i32, %arg1: i32, %arg2: i32) -> (i32, i32, i32) {
    %c1_i32 = arith.constant 1 : i32
    %0 = arith.muli %arg0, %c1_i32 : i32
    %1 = arith.addi %0, %arg1 : i32
    %c0_i32 = arith.constant 0 : i32
    %c0_i32_0 = arith.constant 0 : i32
    %c0_i32_1 = arith.constant 0 : i32
    return %1, %c0_i32, %c0_i32_0 : i32, i32, i32
  }
}

</mosaic_0001>

<llo_original>
// kernel: tpu_custom_call.1
$region0: #{tpu_custom_call.1}
  #allocation0 [shape = 'u32[]', space=smem, size = 0x4, offset = 0x4, fixed_abs, tag = 'smem constant byte address 0x4 - core index']
  #allocation1 [shape = 'u32[144,128]{1,0:T(1,128)}', space=vmem, size = 0x12000, scoped, tag = 'internal scratch']
  %s0 = inlined_call_operand.hbm [shape: f32[2,4,256], index: 0, kind: input, shape index: {}]
  %s1 = inlined_call_operand.hbm [shape: s32[2,1,256], index: 1, kind: input, shape index: {}]
  %s2 = inlined_call_operand.hbm [shape: f32[2,1,128], index: 2, kind: output, shape index: {}]
  %s3 = sld [smem:[#allocation0]]
  $region53: #{tpu_custom_call.1} parent=0
    _
  %s5 = ssub.s32 1, %s3
  %s6 = scalar_select 0, %s5, %s3
  $region1: #{tpu_custom_call.1} parent=0
    #allocation2 [shape = 'u8[8192]{0}', space=vmem, size = 0x2000, scoped, tag = 'input window, operand 0']
    #allocation3 [shape = 's32[2]{0}', space=sflag, size = 0x8, scoped, tag = 'scoped memory for tpu_custom_call.1']
    #allocation4 [shape = 's32[2]{0}', space=sflag, size = 0x8, scoped, tag = 'scoped memory for tpu_custom_call.1']
    #allocation5 [shape = 'u8[2048]{0}', space=vmem, size = 0x800, scoped, tag = 'input window, operand 1']
    #allocation6 [shape = 's32[2]{0}', space=sflag, size = 0x8, scoped, tag = 'scoped memory for tpu_custom_call.1']
    #allocation7 [shape = 'u8[1024]{0}', space=vmem, size = 0x400, scoped, tag = 'output window, operand 0']
    %7 = vsyncpa [#allocation3], 0
    %s8 = scalar_lea.sflag [#allocation3], 1
    %9 = vsyncpa %s8, 0
    %10 = vsyncpa [#allocation6], 0
    %s11 = scalar_lea.sflag [#allocation6], 1
    %12 = vsyncpa %s11, 0
    %13 = vsyncpa [#allocation4], 0
    %s14 = scalar_lea.sflag [#allocation4], 1
    %15 = vsyncpa %s14, 0
    loop: start=0, step=1, limit=4
    $region2: #{tpu_custom_call.1} parent=1 // loop_pre_header
      _
    $region3: #{tpu_custom_call.1} parent=1 // loop_header
      %s17 = sphi 0, %s21
      %p18 = scmp.ge.s32.totalorder %s17, 4
      %s24 = sphi 0, %s43
      %s25 = sphi 0, %s39
      %s26 = sphi 0, %s35
      %s27 = sphi 0, %s24
      %s28 = sphi 0, %s25
      %s29 = sphi 0, %s26
      %s30 = sphi 0, %s27
      %s31 = sphi 0, %s28
      %s32 = sphi 0, %s29
      %s48 = sphi 0, %s50
      %s51 = sphi 0, %s48
      %s52 = sphi 0, %s51
      %s68 = sphi 0, %s52
      %s76 = sphi 0, %s78
      %s79 = sphi 0, %s76
      %s80 = sphi 0, %s79
      %s96 = sphi 0, %s80
      %s104 = sphi 0, %s106
      %s107 = sphi 0, %s104
      %s108 = sphi 0, %s107
      %s124 = sphi 0, %s108
    $region4: #{tpu_custom_call.1} parent=1 // loop_header_branch
      %20 = sbr.rel (%p18) target = $region8
    $region5: #{tpu_custom_call.1} parent=1 // loop_body
      %s22 = ssub.s32 %s17, 1
      %s23 = ssub.s32 %s17, 2
      %s33 = sadd.s32 1, %s26
      %p34 = scmp.ge.s32.totalorder %s33, 1
      %s35 = scalar_select %p34, 0, %s33
      %s36 = sadd.s32 1, %s25
      %s37 = scalar_select %p34, %s36, %s25
      %p38 = scmp.ge.s32.totalorder %s37, 1
      %s39 = scalar_select %p38, 0, %s37
      %s40 = sadd.s32 1, %s24
      %s41 = scalar_select %p38, %s40, %s24
      %p42 = scmp.ge.s32.totalorder %s41, 2
      %s43 = scalar_select %p42, 0, %s41
      %s44 = ssub.s32 %s24, %s43
      %s45 = ssub.s32 %s26, %s35
      %s46 = sor.u32 %s44, %s45
      %p47 = scmp.eq.s32.totalorder %s46, 0
      %s49 = sadd.s32 %s48, 1
      %s50 = scalar_select %p47, %s48, %s49
      %p53 = pneg %p47
      %p54 = scmp.eq.s32.totalorder %s17, 1
      %p55 = por %p53, %p54
      %p56 = scmp.ne.s32.totalorder %s48, %s51
      %p57 = scmp.eq.s32.totalorder %s17, 0
      %p58 = por %p56, %p57
      %p59 = scmp.ne.s32.totalorder %s48, %s51
      %p60 = scmp.eq.s32.totalorder %s22, 1
      %p61 = por %p59, %p60
      %p62 = scmp.ne.s32.totalorder %s51, %s52
      %p63 = scmp.eq.s32.totalorder %s22, 0
      %p64 = por %p62, %p63
      %p65 = scmp.ne.s32.totalorder %s51, %s52
      %p66 = scmp.eq.s32.totalorder %s23, 1
      %p67 = por %p65, %p66
      %p69 = scmp.ne.s32.totalorder %s52, %s68
      %p70 = scmp.eq.s32.totalorder %s23, 0
      %p71 = por %p69, %p70
      %s72 = ssub.s32 %s24, %s43
      %s73 = ssub.s32 %s26, %s35
      %s74 = sor.u32 %s72, %s73
      %p75 = scmp.eq.s32.totalorder %s74, 0
      %s77 = sadd.s32 %s76, 1
      %s78 = scalar_select %p75, %s76, %s77
      %p81 = pneg %p75
      %p82 = scmp.eq.s32.totalorder %s17, 1
      %p83 = por %p81, %p82
      %p84 = scmp.ne.s32.totalorder %s76, %s79
      %p85 = scmp.eq.s32.totalorder %s17, 0
      %p86 = por %p84, %p85
      %p87 = scmp.ne.s32.totalorder %s76, %s79
      %p88 = scmp.eq.s32.totalorder %s22, 1
      %p89 = por %p87, %p88
      %p90 = scmp.ne.s32.totalorder %s79, %s80
      %p91 = scmp.eq.s32.totalorder %s22, 0
      %p92 = por %p90, %p91
      %p93 = scmp.ne.s32.totalorder %s79, %s80
      %p94 = scmp.eq.s32.totalorder %s23, 1
      %p95 = por %p93, %p94
      %p97 = scmp.ne.s32.totalorder %s80, %s96
      %p98 = scmp.eq.s32.totalorder %s23, 0
      %p99 = por %p97, %p98
      %s100 = sadd.s32 %s24, %s25
      %s101 = sadd.s32 %s43, %s39
      %s102 = ssub.s32 %s100, %s101
      %p103 = scmp.eq.s32.totalorder %s102, 0
      %s105 = sadd.s32 %s104, 1
      %s106 = scalar_select %p103, %s104, %s105
      %p109 = pneg %p103
      %p110 = scmp.eq.s32.totalorder %s17, 1
      %p111 = por %p109, %p110
      %p112 = scmp.ne.s32.totalorder %s104, %s107
      %p113 = scmp.eq.s32.totalorder %s17, 0
      %p114 = por %p112, %p113
      %p115 = scmp.ne.s32.totalorder %s104, %s107
      %p116 = scmp.eq.s32.totalorder %s22, 1
      %p117 = por %p115, %p116
      %p118 = scmp.ne.s32.totalorder %s107, %s108
      %p119 = scmp.eq.s32.totalorder %s22, 0
      %p120 = por %p118, %p119
      %p121 = scmp.ne.s32.totalorder %s107, %s108
      %p122 = scmp.eq.s32.totalorder %s23, 1
      %p123 = por %p121, %p122
      %p125 = scmp.ne.s32.totalorder %s108, %s124
      %p126 = scmp.eq.s32.totalorder %s23, 0
      %p127 = por %p125, %p126
      %p128 = scmp.le.s32.totalorder 1, %s17
      %p129 = scmp.lt.s32.totalorder %s17, 3
      %p130 = pnand %p128, %p129
      %p131 = pneg %p130
      // Predicated region
      $region9: #{tpu_custom_call.1} parent=5 // pred_check
        _
      $region10: #{tpu_custom_call.1} parent=5 // pred_check_branch
        %133 = sbr.rel (%p130) target = $region12
      $region11: #{tpu_custom_call.1} parent=5 // pred_region
        %s134 = ssub.s32 %s17, 1
      $region12: #{tpu_custom_call.1} parent=5 // pred_fallthru
        _
      %p135 = scmp.lt.s32.totalorder %s17, 2
      // Predicated region
      $region13: #{tpu_custom_call.1} parent=5 // pred_check
        %p136 = pneg %p135
      $region14: #{tpu_custom_call.1} parent=5 // pred_check_branch
        %138 = sbr.rel (%p136) target = $region16
      $region15: #{tpu_custom_call.1} parent=5 // pred_region
        // Predicated region
        $region17: #{tpu_custom_call.1} parent=15 // pred_check
          %p139 = pneg %p58
        $region18: #{tpu_custom_call.1} parent=15 // pred_check_branch
          %141 = sbr.rel (%p139) target = $region20
        $region19: #{tpu_custom_call.1} parent=15 // pred_region
          %s142 = sand.u32 %s48, 1
          %s143 = scalar_lea.sflag [#allocation3], %s142
          %s144 = sand.u32 %s48, 1
          %s145 = smul.addr %s144, 8
          %s146 = scalar_lea.vmem [#allocation2], %s145
          %s147 = smul.u32 2, %s26
          %s149 = ssub.s32 128, 128
          %150 = vsyncadd %s143, %s149
          %s151 = smul.addr %s24, 2
          %s152 = sadd.s32 %s147, %s151
          %s153 = smul.addr %s152, 64
          %s154 = scalar_lea.hbm %s0, %s153
          %s156 = sshll.u32 %s146, 4
          %s157 = int_to_ptr.vmem [resolvable:$true] %s156
          %159 = dma.hbm_to_vmem [thread:$0]  %s154, 128, %s157, %s143
        $region20: #{tpu_custom_call.1} parent=15 // pred_fallthru
          _
        // Predicated region
        $region21: #{tpu_custom_call.1} parent=15 // pred_check
          %p160 = pneg %p86
        $region22: #{tpu_custom_call.1} parent=15 // pred_check_branch
          %162 = sbr.rel (%p160) target = $region24
        $region23: #{tpu_custom_call.1} parent=15 // pred_region
          %s163 = sand.u32 %s76, 1
          %s164 = scalar_lea.sflag [#allocation6], %s163
          %s165 = sand.u32 %s76, 1
          %s166 = smul.addr %s165, 2
          %s167 = scalar_lea.vmem [#allocation5], %s166
          %s168 = smul.u32 2, %s26
          %s170 = ssub.s32 32, 32
          %171 = vsyncadd %s164, %s170
          %s172 = smul.addr %s24, 2
          %s173 = sadd.s32 %s168, %s172
          %s174 = smul.addr %s173, 16
          %s175 = scalar_lea.hbm %s1, %s174
          %s177 = sshll.u32 %s167, 4
          %s178 = int_to_ptr.vmem [resolvable:$true] %s177
          %180 = dma.hbm_to_vmem [thread:$0]  %s175, 32, %s178, %s164
        $region24: #{tpu_custom_call.1} parent=15 // pred_fallthru
          _
      $region16: #{tpu_custom_call.1} parent=5 // pred_fallthru
        _
      %p181 = scmp.le.s32.totalorder 1, %s17
      %p182 = scmp.lt.s32.totalorder %s17, 3
      %p183 = pnand %p181, %p182
      %p184 = pneg %p183
      // Predicated region
      $region25: #{tpu_custom_call.1} parent=5 // pred_check
        _
      $region26: #{tpu_custom_call.1} parent=5 // pred_check_branch
        %186 = sbr.rel (%p183) target = $region28
      $region27: #{tpu_custom_call.1} parent=5 // pred_region
        %s187 = ssub.s32 %s17, 1
        %s188 = sand.u32 %s51, 1
        %s189 = scalar_lea.sflag [#allocation3], %s188
        %s190 = sand.u32 %s51, 1
        %s191 = smul.addr %s190, 8
        %s192 = scalar_lea.vmem [#allocation2], %s191
        // Predicated region
        $region29: #{tpu_custom_call.1} parent=27 // pred_check
          %p193 = pneg %p64
        $region30: #{tpu_custom_call.1} parent=27 // pred_check_branch
          %195 = sbr.rel (%p193) target = $region32
        $region31: #{tpu_custom_call.1} parent=27 // pred_region
          %196 = dma.done %s189, 128
        $region32: #{tpu_custom_call.1} parent=27 // pred_fallthru
          _
        %s197 = sand.u32 %s79, 1
        %s198 = scalar_lea.sflag [#allocation6], %s197
        %s199 = sand.u32 %s79, 1
        %s200 = smul.addr %s199, 2
        %s201 = scalar_lea.vmem [#allocation5], %s200
        // Predicated region
        $region33: #{tpu_custom_call.1} parent=27 // pred_check
          %p202 = pneg %p92
        $region34: #{tpu_custom_call.1} parent=27 // pred_check_branch
          %204 = sbr.rel (%p202) target = $region36
        $region35: #{tpu_custom_call.1} parent=27 // pred_region
          %205 = dma.done %s198, 32
        $region36: #{tpu_custom_call.1} parent=27 // pred_fallthru
          _
        %s206 = sand.u32 %s51, 1
        %s207 = scalar_lea.sflag [#allocation3], %s206
        %s208 = sand.u32 %s51, 1
        %s209 = smul.addr %s208, 8
        %s210 = scalar_lea.vmem [#allocation2], %s209
        %p211 = pneg %p64
        %p212 = pneg %p61
        %s213 = sand.u32 %s79, 1
        %s214 = scalar_lea.sflag [#allocation6], %s213
        %s215 = sand.u32 %s79, 1
        %s216 = smul.addr %s215, 2
        %s217 = scalar_lea.vmem [#allocation5], %s216
        %p218 = pneg %p92
        %p219 = pneg %p89
        %p220 = pneg %p120
        %p221 = pneg %p117
        %s222 = sand.u32 %s107, 1
        %s223 = scalar_lea.sflag [#allocation4], %s222
        %s224 = sand.u32 %s107, 1
        %s225 = scalar_lea.vmem [#allocation7], %s224
        %s226 = smul.u32 2, %s29
        %s227 = smul.u32 2, %s29
        %s228 = sadd.s32 %s27, %s28
        %p229 = scmp.eq.s32.totalorder %s29, 0
        // Predicated region
        $region37: #{tpu_custom_call.1} parent=27 // pred_check
          %p230 = pneg %p229
        $region38: #{tpu_custom_call.1} parent=27 // pred_check_branch
          %232 = sbr.rel (%p230) target = $region40
        $region39: #{tpu_custom_call.1} parent=27 // pred_region
          %233 = vst [vmem:[%s225] sm:$0x1] 0.0
        $region40: #{tpu_custom_call.1} parent=27 // pred_fallthru
          _
        %v234 = vld [vmem:[%s192] sm:$0xff]
        %v235 = vld [vmem:[%s201] sm:$0x3]
        %v237 = vcombine.high %v234, %v234
        %vm239 = vcmask 1043456
        %v240 = vsel %vm239, %v234, -inf
        %v241 = vrot.slane %v240, 4
        %v242 = vmax.f32 %v240, %v241
        %v243 = vrot.slane %v242, 2
        %v244 = vmax.f32 %v242, %v243
        %v245 = vrot.slane %v244, 1
        %v246 = vmax.f32 %v244, %v245
        %v247 = vsel %vm239, %v237, -inf
        %v248 = vrot.slane %v247, 4
        %v249 = vmax.f32 %v247, %v248
        %v250 = vrot.slane %v249, 2
        %v251 = vmax.f32 %v249, %v250
        %v252 = vrot.slane %v251, 1
        %v253 = vmax.f32 %v251, %v252
        %v256 = vcombine.low %v246, %v253
        %v258 = vsub.f32 %v234, %v256
        %v259 = vmul.f32 %v258, 1.442695
        %v260 = vpow.pop %v259
        %v262 = vcombine.high %v260, %v260
        %v264 = vsel %vm239, %v260, 0.0
        %v265 = vrot.slane %v264, 4
        %v266 = vadd.f32 %v264, %v265
        %v267 = vrot.slane %v266, 2
        %v268 = vadd.f32 %v266, %v267
        %v269 = vrot.slane %v268, 1
        %v270 = vadd.f32 %v268, %v269
        %v271 = vsel %vm239, %v262, 0.0
        %v272 = vrot.slane %v271, 4
        %v273 = vadd.f32 %v271, %v272
        %v274 = vrot.slane %v273, 2
        %v275 = vadd.f32 %v273, %v274
        %v276 = vrot.slane %v275, 1
        %v277 = vadd.f32 %v275, %v276
        %v278 = vlog2.pop %v270
        %v279 = vmul.f32 %v278, 0.6931472
        %v280 = vlog2.pop %v277
        %v281 = vmul.f32 %v280, 0.6931472
        %v282 = vlaneseq
        %v283 = vshrl.u32 %v282, 7
        %v284 = vlaneseq
        %v285 = vshrl.u32 %v284, 7
        %v286 = vsub.s32 0, %v285
        %v287 = vrot.slane %v235, %v286
        %v288 = vlaneseq
        %v289 = vshrl.u32 %v288, 7
        %v290 = vsub.s32 1, %v289
        %v291 = vrot.slane %v235, %v290
        %vm292 = vcmp.eq.s32.totalorder %v283, %v287
        %vm293 = vcmp.eq.s32.totalorder %v283, %v291
        %v295 = vcombine.high %v258, %v258
        %v297 = vsel %vm292, %v258, 0.0
        %v298 = vsel %vm293, %v295, 0.0
        %v299 = vsel %vm239, %v297, 0.0
        %v300 = vrot.slane %v299, 4
        %v301 = vadd.f32 %v299, %v300
        %v302 = vrot.slane %v301, 2
        %v303 = vadd.f32 %v301, %v302
        %v304 = vrot.slane %v303, 1
        %v305 = vadd.f32 %v303, %v304
        %v306 = vsel %vm239, %v298, 0.0
        %v307 = vrot.slane %v306, 4
        %v308 = vadd.f32 %v306, %v307
        %v309 = vrot.slane %v308, 2
        %v310 = vadd.f32 %v308, %v309
        %v311 = vrot.slane %v310, 1
        %v312 = vadd.f32 %v310, %v311
        %v313 = vsub.f32 %v305, %v279
        %v314 = vsub.f32 %v312, %v281
        %v315 = vmul.f32 %v313, 1.442695
        %v316 = vpow.pop %v315
        %v317 = vmul.f32 %v314, 1.442695
        %v318 = vpow.pop %v317
        %v319 = vsub.f32 1.0, %v316
        %v320 = vsub.f32 1.0, %v318
        %v321 = vmul.f32 %v319, %v319
        %v322 = vmul.f32 %v320, %v320
        %v323 = vmul.f32 %v321, %v313
        %v324 = vmul.f32 %v322, %v314
        %v325 = vsub.f32 0.0, %v323
        %v326 = vsub.f32 0.0, %v324
        %s327 = sadd.s32 %s28, %s29
        %s328 = smul.u32 %s327, 256
        %v329 = vlaneseq
        %v330 = vand.u32 %v329, 127
        %v331 = vadd.s32 %v330, 128
        %v332 = vstv %s328
        %v333 = vadd.s32 %v332, %v330
        %v334 = vadd.s32 %v332, %v331
        %vm335 = vcmp.lt.s32.totalorder %v333, 256
        %vm336 = vcmp.lt.s32.totalorder %v334, 256
        %v337 = vsel %vm335, %v325, 0.0
        %v338 = vsel %vm336, %v326, 0.0
        %v339 = vadd.f32 %v337, %v338
        %340 = vadd.xlane.f32.xlu0 %v339
        %v341 = vpop.xlane.xlu0 %340
        %v342 = vld [vmem:[%s225] sm:$0x1]
        %v343 = vadd.f32 %v342, %v341
        %344 = vst [vmem:[%s225] sm:$0x1] %v343
        %s345 = sand.u32 %s107, 1
        %s346 = scalar_lea.sflag [#allocation4], %s345
        %s347 = sand.u32 %s107, 1
        %s348 = scalar_lea.vmem [#allocation7], %s347
        // Predicated region
        $region41: #{tpu_custom_call.1} parent=27 // pred_check
          %p349 = pneg %p117
        $region42: #{tpu_custom_call.1} parent=27 // pred_check_branch
          %351 = sbr.rel (%p349) target = $region44
        $region43: #{tpu_custom_call.1} parent=27 // pred_region
          %s352 = sadd.s32 %s27, %s28
          %s354 = ssub.s32 16, 16
          %355 = vsyncadd %s346, %s354
          %s356 = smul.addr %s352, 16
          %s357 = scalar_lea.hbm %s2, %s356
          %s359 = sshll.u32 %s348, 4
          %s360 = int_to_ptr.vmem [resolvable:$true] %s359
          %362 = dma.vmem_to_hbm [thread:$0]  %s360, 16, %s357, %s346
        $region44: #{tpu_custom_call.1} parent=27 // pred_fallthru
          _
      $region28: #{tpu_custom_call.1} parent=5 // pred_fallthru
        _
      %p363 = scmp.le.s32.totalorder 2, %s17
      // Predicated region
      $region45: #{tpu_custom_call.1} parent=5 // pred_check
        %p364 = pneg %p363
      $region46: #{tpu_custom_call.1} parent=5 // pred_check_branch
        %366 = sbr.rel (%p364) target = $region48
      $region47: #{tpu_custom_call.1} parent=5 // pred_region
        %s367 = ssub.s32 %s17, 2
        // Predicated region
        $region49: #{tpu_custom_call.1} parent=47 // pred_check
          %p368 = pneg %p123
        $region50: #{tpu_custom_call.1} parent=47 // pred_check_branch
          %370 = sbr.rel (%p368) target = $region52
        $region51: #{tpu_custom_call.1} parent=47 // pred_region
          %s371 = sand.u32 %s108, 1
          %s372 = scalar_lea.sflag [#allocation4], %s371
          %s373 = sand.u32 %s108, 1
          %s374 = scalar_lea.vmem [#allocation7], %s373
          %375 = dma.done %s372, 16
        $region52: #{tpu_custom_call.1} parent=47 // pred_fallthru
          _
      $region48: #{tpu_custom_call.1} parent=5 // pred_fallthru
        _
    $region6: #{tpu_custom_call.1} parent=1 // loop_footer
      %s21 = sadd.s32 1, %s17
    $region7: #{tpu_custom_call.1} parent=1 // loop_footer_branch
      %16 = sbr.rel target = $region3
    $region8: #{tpu_custom_call.1} parent=1 // loop_exit
      _
    %376 = vsyncpa [#allocation3], 1
    %s377 = scalar_lea.sflag [#allocation3], 1
    %378 = vsyncpa %s377, 1
    %379 = vsyncpa [#allocation6], 1
    %s380 = scalar_lea.sflag [#allocation6], 1
    %381 = vsyncpa %s380, 1
    %382 = vsyncpa [#allocation4], 1
    %s383 = scalar_lea.sflag [#allocation4], 1
    %384 = vsyncpa %s383, 1

</llo_original>
